<compile_context>
chip_gen: v5e
topology: v5e:2x2
jax: 0.10.0
libtpu: 0.0.40
codegen_flags: <defaults>
</compile_context>

<pallas_src>
import jax
import jax.numpy as jnp
from jax.experimental import pallas as pl
from jax.experimental.pallas import tpu as pltpu

EPS = 1e-5
LANE = 128
NEG_BIG = -1e30   # finite "-inf" for padded logit columns (f32-safe)


def _round_up(n, m):
    return ((n + m - 1) // m) * m


def _make_kernel(gt, b, h1p, h2p, outp):
    """Kernel processing `gt` independent groups of `b` rows per grid step."""

    def kernel(x_ref, w1_ref, w2_ref, w3_ref, vec_ref, out_ref):
        # Packed BN/bias slab: row0=g1, row1=be1, row2=g2, row3=be2, row4=b3.
        g1 = vec_ref[0:1, :h1p].reshape(1, 1, h1p)
        be1 = vec_ref[1:2, :h1p].reshape(1, 1, h1p)
        g2 = vec_ref[2:3, :h2p].reshape(1, 1, h2p)
        be2 = vec_ref[3:4, :h2p].reshape(1, 1, h2p)
        b3 = vec_ref[4:5, :outp]

        def bn_relu(h, g, be, hp):
            # Per-group train-mode BatchNorm1d fused to one scale/shift + ReLU.
            # [gt*b, hp] -> [gt, b, hp]; with b=8 the reshape is tile aligned.
            hg = h.reshape(gt, b, hp)
            m = jnp.mean(hg, axis=1, keepdims=True)                 # [gt,1,hp]
            q = jnp.mean(hg * hg, axis=1, keepdims=True)
            v = jnp.maximum(q - m * m, 0.0)                         # one-pass var
            s = g * jax.lax.rsqrt(v + EPS)
            t = be - m * s
            return jnp.maximum(hg * s + t, 0.0).reshape(gt * b, hp)

        # Linear1 (bias exactly cancelled by BN mean-subtraction) + BN + ReLU.
        h1 = jnp.dot(x_ref[...].astype(jnp.bfloat16), w1_ref[...],
                     preferred_element_type=jnp.float32)
        h1 = bn_relu(h1, g1, be1, h1p)

        # Linear2 (bias cancelled by BN) + BN + ReLU.
        h2 = jnp.dot(h1.astype(jnp.bfloat16), w2_ref[...],
                     preferred_element_type=jnp.float32)
        h2 = bn_relu(h2, g2, be2, h2p)

        # Linear3 + log_softmax (last axis).  Padded logit columns carry
        # b3 = -1e30 -> exp underflows to 0, so they don't perturb max / lse.
        h3 = jnp.dot(h2.astype(jnp.bfloat16), w3_ref[...],
                     preferred_element_type=jnp.float32) + b3
        mx = jnp.max(h3, axis=-1, keepdims=True)
        sh = h3 - mx
        lse = jnp.log(jnp.sum(jnp.exp(sh), axis=-1, keepdims=True))
        out_ref[...] = sh - lse

    return kernel


def prepare_params(params):
    """One-time prep: lane-pad feature dims, bf16 weights, pack BN vectors."""
    in_dim, h1 = params["w1"].shape
    _, h2 = params["w2"].shape
    _, out_dim = params["w3"].shape
    h1p, h2p, outp = (_round_up(d, LANE) for d in (h1, h2, out_dim))
    w = max(h1p, h2p, outp)

    def pad2(a, rows, cols, fill=0.0, dtype=jnp.float32):
        return jnp.pad(a, ((0, rows - a.shape[0]), (0, cols - a.shape[1])),
                       constant_values=fill).astype(dtype)

    # One [8, w] f32 slab: g1, be1, g2, be2, b3 (+3 zero rows -> 8 sublanes).
    # gamma rows pad with 0 so padded BN features stay exactly 0 after BN.
    vecs = jnp.concatenate([
        pad2(params["g1"], 1, w),
        pad2(params["be1"], 1, w),
        pad2(params["g2"], 1, w),
        pad2(params["be2"], 1, w),
        pad2(params["b3"], 1, w, fill=NEG_BIG),   # mask padded logits
        jnp.zeros((3, w), jnp.float32),
    ], axis=0)

    return dict(
        w1=pad2(params["w1"], in_dim, h1p, dtype=jnp.bfloat16),
        w2=pad2(params["w2"], h1p, h2p, dtype=jnp.bfloat16),
        w3=pad2(params["w3"], h2p, outp, dtype=jnp.bfloat16),
        vecs=vecs,
        dims=(h1p, h2p, outp, out_dim),
    )


def _pick_groups_per_tile(num_groups, b, target_rows):
    """Largest divisor of num_groups whose row tile (gt*b) fits target_rows.

    target_rows=512 -> two 256-row passes through the v6e/v7x MXU per tile
    (four 128-row passes on v5e).  Weights stay VMEM-resident, so only the
    x/out tiles are double-buffered.
    """
    best = 1
    for gt in range(1, num_groups + 1):
        if num_groups % gt == 0 and gt * b <= target_rows:
            best = gt
    return best


def fc_model_forward(x_groups, prepared, target_tile_rows=512):
    """x_groups: [G, B, in_dim] f32 -> [G, B, out_dim] log-probs.

    Each of the G groups is an independent FCModel forward pass (BN statistics
    are computed within its own B rows, matching the PyTorch module applied
    once per batch).
    """
    num_groups, batch, in_dim = x_groups.shape
    h1p, h2p, outp, out_dim = prepared["dims"]

    gt = _pick_groups_per_tile(num_groups, batch, target_tile_rows)
    num_tiles = num_groups // gt
    rows = gt * batch
    assert rows % 8 == 0 or num_tiles == 1, (
        "row tile must be sublane (8) aligned when the grid has >1 step")

    x2 = x_groups.reshape(num_groups * batch, in_dim).astype(jnp.float32)
    kernel = _make_kernel(gt, batch, h1p, h2p, outp)

    out_padded = pl.pallas_call(
        kernel,
        out_shape=jax.ShapeDtypeStruct((num_groups * batch, outp), jnp.float32),
        grid=(num_tiles,),
        in_specs=[
            # x: tiled along the group axis; in_dim=32 left unpadded (full dim).
            pl.BlockSpec((rows, in_dim), lambda i: (i, 0)),
            # Weights + BN slab: constant block index -> copied once,
            # VMEM-resident across all grid steps.
            pl.BlockSpec(prepared["w1"].shape, lambda i: (0, 0)),
            pl.BlockSpec(prepared["w2"].shape, lambda i: (0, 0)),
            pl.BlockSpec(prepared["w3"].shape, lambda i: (0, 0)),
            pl.BlockSpec(prepared["vecs"].shape, lambda i: (0, 0)),
        ],
        out_specs=pl.BlockSpec((rows, outp), lambda i: (i, 0)),
        compiler_params=pltpu.CompilerParams(
            dimension_semantics=("parallel",)),  # v7x: shard groups over 2 TCs
    )(x2, prepared["w1"], prepared["w2"], prepared["w3"], prepared["vecs"])

    # Lane-dense padded output from the kernel; slice back to out_dim here.
    return out_padded[:, :out_dim].reshape(num_groups, batch, out_dim)


def init_params(key, in_dim, hidden_dim1, hidden_dim2, out_dim):
    """Deterministic init mimicking PyTorch Linear's uniform(-1/sqrt(fan_in))."""
    ks = jax.random.split(key, 8)

    def lin(kw, kb, fan_in, fan_out):
        bound = 1.0 / (fan_in ** 0.5)
        w = jax.random.uniform(kw, (fan_in, fan_out), jnp.float32, -bound, bound)
        b = jax.random.uniform(kb, (1, fan_out), jnp.float32, -bound, bound)
        return w, b

    w1, b1 = lin(ks[0], ks[1], in_dim, hidden_dim1)
    w2, b2 = lin(ks[2], ks[3], hidden_dim1, hidden_dim2)
    w3, b3 = lin(ks[4], ks[5], hidden_dim2, out_dim)

    # BatchNorm affine params (PyTorch default weight=1, bias=0); perturb
    # gamma slightly (deterministic) so the affine path is exercised.
    g1 = jnp.ones((1, hidden_dim1), jnp.float32) + 0.1 * jax.random.normal(
        ks[6], (1, hidden_dim1), jnp.float32)
    be1 = jnp.zeros((1, hidden_dim1), jnp.float32)
    g2 = jnp.ones((1, hidden_dim2), jnp.float32) + 0.1 * jax.random.normal(
        ks[7], (1, hidden_dim2), jnp.float32)
    be2 = jnp.zeros((1, hidden_dim2), jnp.float32)

    return dict(w1=w1, b1=b1, g1=g1, be1=be1,
                w2=w2, b2=b2, g2=g2, be2=be2,
                w3=w3, b3=b3)


def reference_forward_grouped(x_groups, p, matmul_dtype=jnp.float32):
    """Per-group PyTorch-semantics reference (keeps b1/b2, two-pass variance).

    matmul_dtype=jnp.bfloat16 mirrors the kernel's matmul input precision
    (accumulation stays f32); matmul_dtype=jnp.float32 is the exact reference.
    """
    def dot(a, w):
        return jnp.dot(a.astype(matmul_dtype), w.astype(matmul_dtype),
                       preferred_element_type=jnp.float32)

    def one_group(x):
        h1 = dot(x, p["w1"]) + p["b1"]
        m1 = jnp.mean(h1, 0, keepdims=True)
        v1 = jnp.mean((h1 - m1) ** 2, 0, keepdims=True)
        h1 = jnp.maximum(p["g1"] * (h1 - m1) / jnp.sqrt(v1 + EPS) + p["be1"], 0.0)
        h2 = dot(h1, p["w2"]) + p["b2"]
        m2 = jnp.mean(h2, 0, keepdims=True)
        v2 = jnp.mean((h2 - m2) ** 2, 0, keepdims=True)
        h2 = jnp.maximum(p["g2"] * (h2 - m2) / jnp.sqrt(v2 + EPS) + p["be2"], 0.0)
        h3 = dot(h2, p["w3"]) + p["b3"]
        return jax.nn.log_softmax(h3, axis=-1)

    return jax.vmap(one_group)(x_groups)


if __name__ == "__main__":
    # BatchNorm1d(100)/BatchNorm1d(50) pin hidden_dim1=100, hidden_dim2=50.
    batch, in_dim, h1_dim, h2_dim, out_dim = 8, 32, 100, 50, 10
    num_groups = 8   # 8 independent forward passes fused into one kernel call

    key = jax.random.PRNGKey(0)
    kx, kp = jax.random.split(key)
    x = jax.random.normal(kx, (num_groups, batch, in_dim), jnp.float32)
    params = init_params(kp, in_dim, h1_dim, h2_dim, out_dim)
    prepared = prepare_params(params)

    # target_tile_rows=32 -> 2 grid steps of 4 groups each at these demo
    # shapes, exercising the tiled grid path (production default is 512).
    out = fc_model_forward(x, prepared, target_tile_rows=32)
    out = jax.block_until_ready(out)
    assert out.shape == (num_groups, batch, out_dim)

    # Tight check vs a reference mirroring the kernel's bf16 matmul inputs.
    ref_bf16 = reference_forward_grouped(x, params, matmul_dtype=jnp.bfloat16)
    assert jnp.allclose(out, ref_bf16, atol=1e-2, rtol=0.0), \
        "mismatch vs bf16-matmul reference"
    # Loose sanity check vs the fully-f32 PyTorch-semantics reference.
    ref_f32 = reference_forward_grouped(x, params, matmul_dtype=jnp.float32)
    assert jnp.allclose(out, ref_f32, atol=0.15, rtol=0.0), \
        "mismatch vs f32 reference"

    print("KERNEL_OK")
</pallas_src>

<mosaic_0001>
module attributes {stable_mosaic.version = 11 : i64} {
  func.func @kernel(%arg0: i32, %arg1: memref<32x32xf32, #tpu.memory_space<vmem>>, %arg2: memref<32x128xbf16, #tpu.memory_space<vmem>>, %arg3: memref<128x128xbf16, #tpu.memory_space<vmem>>, %arg4: memref<128x128xbf16, #tpu.memory_space<vmem>>, %arg5: memref<8x128xf32, #tpu.memory_space<vmem>>, %arg6: memref<32x128xf32, #tpu.memory_space<vmem>>) attributes {dimension_semantics = [#tpu.dimension_semantics<parallel>], iteration_bounds = array<i64: 2>, scalar_prefetch = 0 : i64, scratch_operands = 0 : i64, tpu.core_type = #tpu.core_type<tc>, window_params = [{transform_indices = @transform_0, window_bounds = array<i64: 32, 32>}, {pipeline_mode = #tpu.pipeline_mode<synchronous>, transform_indices = @transform_1, window_bounds = array<i64: 32, 128>}, {pipeline_mode = #tpu.pipeline_mode<synchronous>, transform_indices = @transform_2, window_bounds = array<i64: 128, 128>}, {pipeline_mode = #tpu.pipeline_mode<synchronous>, transform_indices = @transform_3, window_bounds = array<i64: 128, 128>}, {pipeline_mode = #tpu.pipeline_mode<synchronous>, transform_indices = @transform_4, window_bounds = array<i64: 8, 128>}, {transform_indices = @transform_5, window_bounds = array<i64: 32, 128>}]} {
    %c0 = arith.constant 0 : index
    %c0_0 = arith.constant 0 : index
    %0 = vector.load %arg5[%c0, %c0_0] : memref<8x128xf32, #tpu.memory_space<vmem>>, vector<1x128xf32>
    %1 = vector.shape_cast %0 : vector<1x128xf32> to vector<1x1x128xf32>
    %c1 = arith.constant 1 : index
    %c0_1 = arith.constant 0 : index
    %2 = vector.load %arg5[%c1, %c0_1] : memref<8x128xf32, #tpu.memory_space<vmem>>, vector<1x128xf32>
    %3 = vector.shape_cast %2 : vector<1x128xf32> to vector<1x1x128xf32>
    %c2 = arith.constant 2 : index
    %c0_2 = arith.constant 0 : index
    %4 = vector.load %arg5[%c2, %c0_2] : memref<8x128xf32, #tpu.memory_space<vmem>>, vector<1x128xf32>
    %5 = vector.shape_cast %4 : vector<1x128xf32> to vector<1x1x128xf32>
    %c3 = arith.constant 3 : index
    %c0_3 = arith.constant 0 : index
    %6 = vector.load %arg5[%c3, %c0_3] : memref<8x128xf32, #tpu.memory_space<vmem>>, vector<1x128xf32>
    %7 = vector.shape_cast %6 : vector<1x128xf32> to vector<1x1x128xf32>
    %c4 = arith.constant 4 : index
    %c0_4 = arith.constant 0 : index
    %8 = vector.load %arg5[%c4, %c0_4] : memref<8x128xf32, #tpu.memory_space<vmem>>, vector<1x128xf32>
    %c0_5 = arith.constant 0 : index
    %c0_6 = arith.constant 0 : index
    %9 = vector.load %arg1[%c0_5, %c0_6] : memref<32x32xf32, #tpu.memory_space<vmem>>, vector<32x32xf32>
    %10 = arith.truncf %9 : vector<32x32xf32> to vector<32x32xbf16>
    %c0_7 = arith.constant 0 : index
    %c0_8 = arith.constant 0 : index
    %11 = vector.load %arg2[%c0_7, %c0_8] : memref<32x128xbf16, #tpu.memory_space<vmem>>, vector<32x128xbf16>
    %cst = arith.constant dense<0.000000e+00> : vector<32x128xf32>
    %12 = tpu.matmul %10, %11, %cst {dimension_numbers = #tpu.dot_dimension_numbers<[1], [0], [0], [1], [0, 0, 1, 1], [], []>} : vector<32x32xbf16>, vector<32x128xbf16>, vector<32x128xf32> -> vector<32x128xf32>
    %13 = vector.shape_cast %12 : vector<32x128xf32> to vector<4x8x128xf32>
    %cst_9 = arith.constant dense<0.000000e+00> : vector<4x128xf32>
    %14 = vector.multi_reduction <add>, %13, %cst_9 [1] : vector<4x8x128xf32> to vector<4x128xf32>
    %15 = vector.shape_cast %14 : vector<4x128xf32> to vector<4x1x128xf32>
    %cst_10 = arith.constant 8.000000e+00 : f32
    %16 = vector.broadcast %cst_10 : f32 to vector<4x1x128xf32>
    %17 = arith.divf %15, %16 : vector<4x1x128xf32>
    %18 = arith.mulf %13, %13 : vector<4x8x128xf32>
    %cst_11 = arith.constant dense<0.000000e+00> : vector<4x128xf32>
    %19 = vector.multi_reduction <add>, %18, %cst_11 [1] : vector<4x8x128xf32> to vector<4x128xf32>
    %20 = vector.shape_cast %19 : vector<4x128xf32> to vector<4x1x128xf32>
    %cst_12 = arith.constant 8.000000e+00 : f32
    %21 = vector.broadcast %cst_12 : f32 to vector<4x1x128xf32>
    %22 = arith.divf %20, %21 : vector<4x1x128xf32>
    %23 = arith.mulf %17, %17 : vector<4x1x128xf32>
    %24 = arith.subf %22, %23 : vector<4x1x128xf32>
    %cst_13 = arith.constant 0.000000e+00 : f32
    %25 = vector.broadcast %cst_13 : f32 to vector<4x1x128xf32>
    %26 = arith.maximumf %24, %25 : vector<4x1x128xf32>
    %cst_14 = arith.constant 9.99999974E-6 : f32
    %27 = vector.broadcast %cst_14 : f32 to vector<4x1x128xf32>
    %28 = arith.addf %26, %27 : vector<4x1x128xf32>
    %29 = math.rsqrt %28 : vector<4x1x128xf32>
    %30 = vector.broadcast %1 : vector<1x1x128xf32> to vector<4x1x128xf32>
    %31 = arith.mulf %30, %29 : vector<4x1x128xf32>
    %32 = arith.mulf %17, %31 : vector<4x1x128xf32>
    %33 = vector.broadcast %3 : vector<1x1x128xf32> to vector<4x1x128xf32>
    %34 = arith.subf %33, %32 : vector<4x1x128xf32>
    %35 = vector.broadcast %31 : vector<4x1x128xf32> to vector<4x8x128xf32>
    %36 = arith.mulf %13, %35 : vector<4x8x128xf32>
    %37 = vector.broadcast %34 : vector<4x1x128xf32> to vector<4x8x128xf32>
    %38 = arith.addf %36, %37 : vector<4x8x128xf32>
    %cst_15 = arith.constant 0.000000e+00 : f32
    %39 = vector.broadcast %cst_15 : f32 to vector<4x8x128xf32>
    %40 = arith.maximumf %38, %39 : vector<4x8x128xf32>
    %41 = vector.shape_cast %40 : vector<4x8x128xf32> to vector<32x128xf32>
    %42 = arith.truncf %41 : vector<32x128xf32> to vector<32x128xbf16>
    %c0_16 = arith.constant 0 : index
    %c0_17 = arith.constant 0 : index
    %43 = vector.load %arg3[%c0_16, %c0_17] : memref<128x128xbf16, #tpu.memory_space<vmem>>, vector<128x128xbf16>
    %cst_18 = arith.constant dense<0.000000e+00> : vector<32x128xf32>
    %44 = tpu.matmul %42, %43, %cst_18 {dimension_numbers = #tpu.dot_dimension_numbers<[1], [0], [0], [1], [0, 0, 1, 1], [], []>} : vector<32x128xbf16>, vector<128x128xbf16>, vector<32x128xf32> -> vector<32x128xf32>
    %45 = vector.shape_cast %44 : vector<32x128xf32> to vector<4x8x128xf32>
    %cst_19 = arith.constant dense<0.000000e+00> : vector<4x128xf32>
    %46 = vector.multi_reduction <add>, %45, %cst_19 [1] : vector<4x8x128xf32> to vector<4x128xf32>
    %47 = vector.shape_cast %46 : vector<4x128xf32> to vector<4x1x128xf32>
    %cst_20 = arith.constant 8.000000e+00 : f32
    %48 = vector.broadcast %cst_20 : f32 to vector<4x1x128xf32>
    %49 = arith.divf %47, %48 : vector<4x1x128xf32>
    %50 = arith.mulf %45, %45 : vector<4x8x128xf32>
    %cst_21 = arith.constant dense<0.000000e+00> : vector<4x128xf32>
    %51 = vector.multi_reduction <add>, %50, %cst_21 [1] : vector<4x8x128xf32> to vector<4x128xf32>
    %52 = vector.shape_cast %51 : vector<4x128xf32> to vector<4x1x128xf32>
    %cst_22 = arith.constant 8.000000e+00 : f32
    %53 = vector.broadcast %cst_22 : f32 to vector<4x1x128xf32>
    %54 = arith.divf %52, %53 : vector<4x1x128xf32>
    %55 = arith.mulf %49, %49 : vector<4x1x128xf32>
    %56 = arith.subf %54, %55 : vector<4x1x128xf32>
    %cst_23 = arith.constant 0.000000e+00 : f32
    %57 = vector.broadcast %cst_23 : f32 to vector<4x1x128xf32>
    %58 = arith.maximumf %56, %57 : vector<4x1x128xf32>
    %cst_24 = arith.constant 9.99999974E-6 : f32
    %59 = vector.broadcast %cst_24 : f32 to vector<4x1x128xf32>
    %60 = arith.addf %58, %59 : vector<4x1x128xf32>
    %61 = math.rsqrt %60 : vector<4x1x128xf32>
    %62 = vector.broadcast %5 : vector<1x1x128xf32> to vector<4x1x128xf32>
    %63 = arith.mulf %62, %61 : vector<4x1x128xf32>
    %64 = arith.mulf %49, %63 : vector<4x1x128xf32>
    %65 = vector.broadcast %7 : vector<1x1x128xf32> to vector<4x1x128xf32>
    %66 = arith.subf %65, %64 : vector<4x1x128xf32>
    %67 = vector.broadcast %63 : vector<4x1x128xf32> to vector<4x8x128xf32>
    %68 = arith.mulf %45, %67 : vector<4x8x128xf32>
    %69 = vector.broadcast %66 : vector<4x1x128xf32> to vector<4x8x128xf32>
    %70 = arith.addf %68, %69 : vector<4x8x128xf32>
    %cst_25 = arith.constant 0.000000e+00 : f32
    %71 = vector.broadcast %cst_25 : f32 to vector<4x8x128xf32>
    %72 = arith.maximumf %70, %71 : vector<4x8x128xf32>
    %73 = vector.shape_cast %72 : vector<4x8x128xf32> to vector<32x128xf32>
    %74 = arith.truncf %73 : vector<32x128xf32> to vector<32x128xbf16>
    %c0_26 = arith.constant 0 : index
    %c0_27 = arith.constant 0 : index
    %75 = vector.load %arg4[%c0_26, %c0_27] : memref<128x128xbf16, #tpu.memory_space<vmem>>, vector<128x128xbf16>
    %cst_28 = arith.constant dense<0.000000e+00> : vector<32x128xf32>
    %76 = tpu.matmul %74, %75, %cst_28 {dimension_numbers = #tpu.dot_dimension_numbers<[1], [0], [0], [1], [0, 0, 1, 1], [], []>} : vector<32x128xbf16>, vector<128x128xbf16>, vector<32x128xf32> -> vector<32x128xf32>
    %77 = vector.broadcast %8 : vector<1x128xf32> to vector<32x128xf32>
    %78 = arith.addf %76, %77 : vector<32x128xf32>
    %cst_29 = arith.constant dense<0xFF800000> : vector<32xf32>
    %79 = vector.multi_reduction <maximumf>, %78, %cst_29 [1] : vector<32x128xf32> to vector<32xf32>
    %80 = vector.shape_cast %79 : vector<32xf32> to vector<32x1xf32>
    %81 = vector.broadcast %80 : vector<32x1xf32> to vector<32x128xf32>
    %82 = arith.subf %78, %81 : vector<32x128xf32>
    %83 = math.exp %82 : vector<32x128xf32>
    %cst_30 = arith.constant dense<0.000000e+00> : vector<32xf32>
    %84 = vector.multi_reduction <add>, %83, %cst_30 [1] : vector<32x128xf32> to vector<32xf32>
    %85 = vector.shape_cast %84 : vector<32xf32> to vector<32x1xf32>
    %86 = math.log %85 : vector<32x1xf32>
    %87 = vector.broadcast %86 : vector<32x1xf32> to vector<32x128xf32>
    %88 = arith.subf %82, %87 : vector<32x128xf32>
    %c0_31 = arith.constant 0 : index
    %c0_32 = arith.constant 0 : index
    %89 = vector.load %arg6[%c0_31, %c0_32] : memref<32x128xf32, #tpu.memory_space<vmem>>, vector<32x128xf32>
    tpu.vector_store %arg6[%c0_31, %c0_32], %88 {strides = array<i32>} : memref<32x128xf32, #tpu.memory_space<vmem>>, vector<32x128xf32>,
    return
  }
  func.func @transform_0(%arg0: i32) -> (i32, i32) {
    %c0_i32 = arith.constant 0 : i32
    %c0_i32_0 = arith.constant 0 : i32
    return %arg0, %c0_i32 : i32, i32
  }
  func.func @transform_1(%arg0: i32) -> (i32, i32) {
    %c0_i32 = arith.constant 0 : i32
    %c0_i32_0 = arith.constant 0 : i32
    %c0_i32_1 = arith.constant 0 : i32
    return %c0_i32, %c0_i32_0 : i32, i32
  }
  func.func @transform_2(%arg0: i32) -> (i32, i32) {
    %c0_i32 = arith.constant 0 : i32
    %c0_i32_0 = arith.constant 0 : i32
    %c0_i32_1 = arith.constant 0 : i32
    return %c0_i32, %c0_i32_0 : i32, i32
  }
  func.func @transform_3(%arg0: i32) -> (i32, i32) {
    %c0_i32 = arith.constant 0 : i32
    %c0_i32_0 = arith.constant 0 : i32
    %c0_i32_1 = arith.constant 0 : i32
    return %c0_i32, %c0_i32_0 : i32, i32
  }
  func.func @transform_4(%arg0: i32) -> (i32, i32) {
    %c0_i32 = arith.constant 0 : i32
    %c0_i32_0 = arith.constant 0 : i32
    %c0_i32_1 = arith.constant 0 : i32
    return %c0_i32, %c0_i32_0 : i32, i32
  }
  func.func @transform_5(%arg0: i32) -> (i32, i32) {
    %c0_i32 = arith.constant 0 : i32
    %c0_i32_0 = arith.constant 0 : i32
    return %arg0, %c0_i32 : i32, i32
  }
}

</mosaic_0001>

<llo_original>
// kernel: tpu_custom_call.1
$region0: #{tpu_custom_call.1}
  #allocation0 [shape = 'u32[]', space=smem, size = 0x4, offset = 0x4, fixed_abs, tag = 'smem constant byte address 0x4 - core index']
  #allocation1 [shape = 'u32[72,128]{1,0:T(1,128)}', space=vmem, size = 0x9000, scoped, tag = 'internal scratch']
  %s0 = inlined_call_operand.vmem [shape: f32[64,32], index: 0, kind: input, shape index: {}]
  %s1 = inlined_call_operand.vmem [shape: bf16[32,128], index: 1, kind: input, shape index: {}]
  %s2 = inlined_call_operand.vmem [shape: bf16[128,128], index: 2, kind: input, shape index: {}]
  %s3 = inlined_call_operand.hbm [shape: bf16[128,128], index: 3, kind: input, shape index: {}]
  %s4 = inlined_call_operand.vmem [shape: f32[8,128], index: 4, kind: input, shape index: {}]
  %s5 = inlined_call_operand.hbm [shape: f32[64,128], index: 5, kind: output, shape index: {}]
  %s6 = sld [smem:[#allocation0]]
  $region57: #{tpu_custom_call.1} parent=0
    _
  %s8 = ssub.s32 1, %s6
  %s9 = scalar_select 0, %s8, %s6
  $region1: #{tpu_custom_call.1} parent=0
    #allocation2 [shape = 'u8[32768]{0}', space=vmem, size = 0x8000, scoped, tag = 'input window, operand 3, single buffered']
    #allocation3 [shape = 's32[2]{0}', space=sflag, size = 0x8, scoped, tag = 'scoped memory for tpu_custom_call.1']
    #allocation4 [shape = 's32[2]{0}', space=sflag, size = 0x8, scoped, tag = 'scoped memory for tpu_custom_call.1']
    #allocation5 [shape = 'u8[32768]{0}', space=vmem, size = 0x8000, scoped, tag = 'output window, operand 0']
    %10 = vsyncpa [#allocation3], 0
    %11 = vsyncpa [#allocation4], 0
    %s12 = scalar_lea.sflag [#allocation4], 1
    %13 = vsyncpa %s12, 0
    loop: start=0, step=1, limit=4
    $region2: #{tpu_custom_call.1} parent=1 // loop_pre_header
      _
    $region3: #{tpu_custom_call.1} parent=1 // loop_header
      %s15 = sphi 0, %s19
      %p16 = scmp.ge.s32.totalorder %s15, 4
      %s25 = sphi 0, %s27
      %s28 = sphi 0, %s25
      %s29 = sphi 0, %s28
      %s45 = sphi 0, %s29
      %s49 = sphi 0, %s49
      %s51 = sphi 0, %s49
      %s52 = sphi 0, %s51
      %s66 = sphi 0, %s52
      %s70 = sphi 0, %s70
      %s72 = sphi 0, %s70
      %s73 = sphi 0, %s72
      %s87 = sphi 0, %s73
      %s91 = sphi 0, %s91
      %s93 = sphi 0, %s91
      %s94 = sphi 0, %s93
      %s108 = sphi 0, %s94
      %s112 = sphi 0, %s112
      %s114 = sphi 0, %s112
      %s115 = sphi 0, %s114
      %s129 = sphi 0, %s115
      %s135 = sphi 0, %s137
      %s138 = sphi 0, %s135
      %s139 = sphi 0, %s138
      %s155 = sphi 0, %s139
    $region4: #{tpu_custom_call.1} parent=1 // loop_header_branch
      %18 = sbr.rel (%p16) target = $region8
    $region5: #{tpu_custom_call.1} parent=1 // loop_body
      %s20 = ssub.s32 %s15, 1
      %s21 = ssub.s32 %s15, 2
      %s22 = sadd.s32 %s15, 1
      %s23 = ssub.s32 %s15, %s22
      %p24 = scmp.eq.s32.totalorder %s23, 0
      %s26 = sadd.s32 %s25, 1
      %s27 = scalar_select %p24, %s25, %s26
      %p30 = pneg %p24
      %p31 = scmp.eq.s32.totalorder %s15, 1
      %p32 = por %p30, %p31
      %p33 = scmp.ne.s32.totalorder %s25, %s28
      %p34 = scmp.eq.s32.totalorder %s15, 0
      %p35 = por %p33, %p34
      %p36 = scmp.ne.s32.totalorder %s25, %s28
      %p37 = scmp.eq.s32.totalorder %s20, 1
      %p38 = por %p36, %p37
      %p39 = scmp.ne.s32.totalorder %s28, %s29
      %p40 = scmp.eq.s32.totalorder %s20, 0
      %p41 = por %p39, %p40
      %p42 = scmp.ne.s32.totalorder %s28, %s29
      %p43 = scmp.eq.s32.totalorder %s21, 1
      %p44 = por %p42, %p43
      %p46 = scmp.ne.s32.totalorder %s29, %s45
      %p47 = scmp.eq.s32.totalorder %s21, 0
      %p48 = por %p46, %p47
      %s50 = sadd.s32 %s49, 1
      %p53 = scmp.eq.s32.totalorder %s15, 1
      %p54 = scmp.ne.s32.totalorder %s49, %s51
      %p55 = scmp.eq.s32.totalorder %s15, 0
      %p56 = por %p54, %p55
      %p57 = scmp.ne.s32.totalorder %s49, %s51
      %p58 = scmp.eq.s32.totalorder %s20, 1
      %p59 = por %p57, %p58
      %p60 = scmp.ne.s32.totalorder %s51, %s52
      %p61 = scmp.eq.s32.totalorder %s20, 0
      %p62 = por %p60, %p61
      %p63 = scmp.ne.s32.totalorder %s51, %s52
      %p64 = scmp.eq.s32.totalorder %s21, 1
      %p65 = por %p63, %p64
      %p67 = scmp.ne.s32.totalorder %s52, %s66
      %p68 = scmp.eq.s32.totalorder %s21, 0
      %p69 = por %p67, %p68
      %s71 = sadd.s32 %s70, 1
      %p74 = scmp.eq.s32.totalorder %s15, 1
      %p75 = scmp.ne.s32.totalorder %s70, %s72
      %p76 = scmp.eq.s32.totalorder %s15, 0
      %p77 = por %p75, %p76
      %p78 = scmp.ne.s32.totalorder %s70, %s72
      %p79 = scmp.eq.s32.totalorder %s20, 1
      %p80 = por %p78, %p79
      %p81 = scmp.ne.s32.totalorder %s72, %s73
      %p82 = scmp.eq.s32.totalorder %s20, 0
      %p83 = por %p81, %p82
      %p84 = scmp.ne.s32.totalorder %s72, %s73
      %p85 = scmp.eq.s32.totalorder %s21, 1
      %p86 = por %p84, %p85
      %p88 = scmp.ne.s32.totalorder %s73, %s87
      %p89 = scmp.eq.s32.totalorder %s21, 0
      %p90 = por %p88, %p89
      %s92 = sadd.s32 %s91, 1
      %p95 = scmp.eq.s32.totalorder %s15, 1
      %p96 = scmp.ne.s32.totalorder %s91, %s93
      %p97 = scmp.eq.s32.totalorder %s15, 0
      %p98 = por %p96, %p97
      %p99 = scmp.ne.s32.totalorder %s91, %s93
      %p100 = scmp.eq.s32.totalorder %s20, 1
      %p101 = por %p99, %p100
      %p102 = scmp.ne.s32.totalorder %s93, %s94
      %p103 = scmp.eq.s32.totalorder %s20, 0
      %p104 = por %p102, %p103
      %p105 = scmp.ne.s32.totalorder %s93, %s94
      %p106 = scmp.eq.s32.totalorder %s21, 1
      %p107 = por %p105, %p106
      %p109 = scmp.ne.s32.totalorder %s94, %s108
      %p110 = scmp.eq.s32.totalorder %s21, 0
      %p111 = por %p109, %p110
      %s113 = sadd.s32 %s112, 1
      %p116 = scmp.eq.s32.totalorder %s15, 1
      %p117 = scmp.ne.s32.totalorder %s112, %s114
      %p118 = scmp.eq.s32.totalorder %s15, 0
      %p119 = por %p117, %p118
      %p120 = scmp.ne.s32.totalorder %s112, %s114
      %p121 = scmp.eq.s32.totalorder %s20, 1
      %p122 = por %p120, %p121
      %p123 = scmp.ne.s32.totalorder %s114, %s115
      %p124 = scmp.eq.s32.totalorder %s20, 0
      %p125 = por %p123, %p124
      %p126 = scmp.ne.s32.totalorder %s114, %s115
      %p127 = scmp.eq.s32.totalorder %s21, 1
      %p128 = por %p126, %p127
      %p130 = scmp.ne.s32.totalorder %s115, %s129
      %p131 = scmp.eq.s32.totalorder %s21, 0
      %p132 = por %p130, %p131
      %s133 = ssub.s32 %s15, %s22
      %p134 = scmp.eq.s32.totalorder %s133, 0
      %s136 = sadd.s32 %s135, 1
      %s137 = scalar_select %p134, %s135, %s136
      %p140 = pneg %p134
      %p141 = scmp.eq.s32.totalorder %s15, 1
      %p142 = por %p140, %p141
      %p143 = scmp.ne.s32.totalorder %s135, %s138
      %p144 = scmp.eq.s32.totalorder %s15, 0
      %p145 = por %p143, %p144
      %p146 = scmp.ne.s32.totalorder %s135, %s138
      %p147 = scmp.eq.s32.totalorder %s20, 1
      %p148 = por %p146, %p147
      %p149 = scmp.ne.s32.totalorder %s138, %s139
      %p150 = scmp.eq.s32.totalorder %s20, 0
      %p151 = por %p149, %p150
      %p152 = scmp.ne.s32.totalorder %s138, %s139
      %p153 = scmp.eq.s32.totalorder %s21, 1
      %p154 = por %p152, %p153
      %p156 = scmp.ne.s32.totalorder %s139, %s155
      %p157 = scmp.eq.s32.totalorder %s21, 0
      %p158 = por %p156, %p157
      %p159 = scmp.le.s32.totalorder 1, %s15
      %p160 = scmp.lt.s32.totalorder %s15, 3
      %p161 = pnand %p159, %p160
      %p162 = pneg %p161
      // Predicated region
      $region9: #{tpu_custom_call.1} parent=5 // pred_check
        _
      $region10: #{tpu_custom_call.1} parent=5 // pred_check_branch
        %164 = sbr.rel (%p161) target = $region12
      $region11: #{tpu_custom_call.1} parent=5 // pred_region
        %s165 = ssub.s32 %s15, 1
        // Predicated region
        $region13: #{tpu_custom_call.1} parent=11 // pred_check
          %p166 = pneg %p62
        $region14: #{tpu_custom_call.1} parent=11 // pred_check_branch
          %168 = sbr.rel (%p166) target = $region16
        $region15: #{tpu_custom_call.1} parent=11 // pred_region
          _
        $region16: #{tpu_custom_call.1} parent=11 // pred_fallthru
          _
        // Predicated region
        $region17: #{tpu_custom_call.1} parent=11 // pred_check
          %p169 = pneg %p83
        $region18: #{tpu_custom_call.1} parent=11 // pred_check_branch
          %171 = sbr.rel (%p169) target = $region20
        $region19: #{tpu_custom_call.1} parent=11 // pred_region
          _
        $region20: #{tpu_custom_call.1} parent=11 // pred_fallthru
          _
        // Predicated region
        $region21: #{tpu_custom_call.1} parent=11 // pred_check
          %p172 = pneg %p104
        $region22: #{tpu_custom_call.1} parent=11 // pred_check_branch
          %174 = sbr.rel (%p172) target = $region24
        $region23: #{tpu_custom_call.1} parent=11 // pred_region
          %176 = vsyncadd [#allocation3], 0
          %s177 = sshll.u32 %s3, 4
          %s178 = int_to_ptr.hbm [resolvable:$true] %s177
          %s179 = sshll.u32 [#allocation2], 4
          %s180 = int_to_ptr.vmem [resolvable:$true] %s179
          %185 = dma.hbm_to_vmem [thread:$0]  %s178, 1024, %s180, [#allocation3], 64, 64, 4
        $region24: #{tpu_custom_call.1} parent=11 // pred_fallthru
          _
        // Predicated region
        $region25: #{tpu_custom_call.1} parent=11 // pred_check
          %p186 = pneg %p125
        $region26: #{tpu_custom_call.1} parent=11 // pred_check_branch
          %188 = sbr.rel (%p186) target = $region28
        $region27: #{tpu_custom_call.1} parent=11 // pred_region
          _
        $region28: #{tpu_custom_call.1} parent=11 // pred_fallthru
          _
      $region12: #{tpu_custom_call.1} parent=5 // pred_fallthru
        _
      %p189 = scmp.lt.s32.totalorder %s15, 2
      // Predicated region
      $region29: #{tpu_custom_call.1} parent=5 // pred_check
        %p190 = pneg %p189
      $region30: #{tpu_custom_call.1} parent=5 // pred_check_branch
        %192 = sbr.rel (%p190) target = $region32
      $region31: #{tpu_custom_call.1} parent=5 // pred_region
        // Predicated region
        $region33: #{tpu_custom_call.1} parent=31 // pred_check
          %p193 = pneg %p35
        $region34: #{tpu_custom_call.1} parent=31 // pred_check_branch
          %195 = sbr.rel (%p193) target = $region36
        $region35: #{tpu_custom_call.1} parent=31 // pred_region
          %s196 = smul.u32 4, %s15
          %p197 = scmp.lt.s32.totalorder %s196, 7
          %s198 = scalar_select %p197, %s196, 7
          %s199 = smul.addr %s198, 8
          %s200 = scalar_lea.vmem %s0, %s199
          %s201 = smul.u32 4, %s15
        $region36: #{tpu_custom_call.1} parent=31 // pred_fallthru
          _
      $region32: #{tpu_custom_call.1} parent=5 // pred_fallthru
        _
      %p202 = scmp.le.s32.totalorder 1, %s15
      %p203 = scmp.lt.s32.totalorder %s15, 3
      %p204 = pnand %p202, %p203
      %p205 = pneg %p204
      // Predicated region
      $region37: #{tpu_custom_call.1} parent=5 // pred_check
        _
      $region38: #{tpu_custom_call.1} parent=5 // pred_check_branch
        %207 = sbr.rel (%p204) target = $region40
      $region39: #{tpu_custom_call.1} parent=5 // pred_region
        %s208 = ssub.s32 %s15, 1
        // Predicated region
        $region41: #{tpu_custom_call.1} parent=39 // pred_check
          %p209 = pneg %p104
        $region42: #{tpu_custom_call.1} parent=39 // pred_check_branch
          %211 = sbr.rel (%p209) target = $region44
        $region43: #{tpu_custom_call.1} parent=39 // pred_region
          %213 = dma.done [#allocation3], 1024
        $region44: #{tpu_custom_call.1} parent=39 // pred_fallthru
          _
        %s214 = smul.u32 4, %s20
        %p215 = scmp.lt.s32.totalorder %s214, 7
        %s216 = scalar_select %p215, %s214, 7
        %s217 = smul.addr %s216, 8
        %s218 = scalar_lea.vmem %s0, %s217
        %p219 = pneg %p41
        %p220 = pneg %p38
        %p221 = pneg %p62
        %p222 = pneg %p59
        %p223 = pneg %p83
        %p224 = pneg %p80
        %p225 = pneg %p104
        %p226 = pneg %p101
        %p227 = pneg %p125
        %p228 = pneg %p122
        %p229 = pneg %p151
        %p230 = pneg %p148
        %s231 = sand.u32 %s138, 1
        %s232 = scalar_lea.sflag [#allocation4], %s231
        %s233 = sand.u32 %s138, 1
        %s234 = smul.addr %s233, 32
        %s235 = scalar_lea.vmem [#allocation5], %s234
        %s236 = smul.u32 4, %s20
        %p237 = scmp.lt.s32.totalorder %s236, 7
        %s238 = scalar_select %p237, %s236, 7
        %s239 = smul.addr %s238, 8
        %s240 = scalar_lea.vmem %s0, %s239
        %s241 = smul.u32 4, %s20
        %s242 = smul.u32 4, %s20
        %v244 = vld [vmem:[%s4] sm:$0x1]
        %v245 = vld [vmem:[%s4 + $0x1] sm:$0x1]
        %v246 = vld [vmem:[%s4 + $0x2] sm:$0x1]
        %v247 = vld [vmem:[%s4 + $0x3] sm:$0x1]
        %v248 = vld [vmem:[%s4 + $0x4] sm:$0x1]
        %v249 = vld [vmem:[%s240] sm:$0xff]
        %v250 = vld [vmem:[%s240 + $0x8] sm:$0xff]
        %v251 = vld [vmem:[%s240 + $0x10] sm:$0xff]
        %v252 = vld [vmem:[%s240 + $0x18] sm:$0xff]
        %v253 = vpack.c.bf16 %v250, %v249
        %v254 = vpack.c.bf16 %v252, %v251
        %v255 = vld [vmem:[%s1] sm:$0xf]
        %v256 = vld [vmem:[%s1 + $0x4] sm:$0xf]
        %v257 = vld [vmem:[%s1 + $0x8] sm:$0xf]
        %v258 = vld [vmem:[%s1 + $0xc] sm:$0xf]
        %v263 = vunpack.c.l.b16 %v255
        %v264 = vunpack.c.l.b16 %v256
        %v265 = vunpack.c.l.b16 %v257
        %v266 = vunpack.c.l.b16 %v258
        %v267 = vpack.c.b16 %v264, %v263
        %v268 = vpack.c.b16 %v266, %v265
        %vm271 = vcmask 261120
        %v273 = vsel %vm271, %v253, 0
        %v276 = vsel %vm271, %v254, 0
        %278 = vmatpush.bf16.msra.mxu0 0
        %279 = vmatpush.bf16.msra.mxu0 0
        %280 = vmatpush.bf16.msra.mxu0 0
        %281 = vmatpush.bf16.msra.mxu0 0
        %282 = vmatpush.bf16.msra.mxu0 0
        %283 = vmatpush.bf16.msra.mxu0 0
        %284 = vmatpush.bf16.msra.mxu0 %v268
        %285 = vmatpush.bf16.msra.mxu0 %v267
        %286 = vmatmul.bf16.gmra.mxu0 %v273
        %v287 = vpop.f32.mrf.mxu0
        %v288 = vadd.f32 0.0, %v287
        %v289 = vpop.f32.mrf.mxu0
        %v290 = vadd.f32 0.0, %v289
        %291 = vmatmul.bf16.gmra.mxu0 %v276
        %v292 = vpop.f32.mrf.mxu0
        %v293 = vadd.f32 0.0, %v292
        %v294 = vpop.f32.mrf.mxu0
        %v295 = vadd.f32 0.0, %v294
        %296 = vdwg.mxu0
        %v297 = vrot.slane %v288, 4
        %v298 = vadd.f32 %v288, %v297
        %v299 = vrot.slane %v298, 2
        %v300 = vadd.f32 %v298, %v299
        %v301 = vrot.slane %v300, 1
        %v302 = vadd.f32 %v300, %v301
        %v303 = vrot.slane %v290, 4
        %v304 = vadd.f32 %v290, %v303
        %v305 = vrot.slane %v304, 2
        %v306 = vadd.f32 %v304, %v305
        %v307 = vrot.slane %v306, 1
        %v308 = vadd.f32 %v306, %v307
        %v309 = vrot.slane %v293, 4
        %v310 = vadd.f32 %v293, %v309
        %v311 = vrot.slane %v310, 2
        %v312 = vadd.f32 %v310, %v311
        %v313 = vrot.slane %v312, 1
        %v314 = vadd.f32 %v312, %v313
        %v315 = vrot.slane %v295, 4
        %v316 = vadd.f32 %v295, %v315
        %v317 = vrot.slane %v316, 2
        %v318 = vadd.f32 %v316, %v317
        %v319 = vrot.slane %v318, 1
        %v320 = vadd.f32 %v318, %v319
        %v321 = vrcp.pop 8.0
        %v322 = vmul.f32 8.0, %v321
        %v323 = vsub.f32 1.0, %v322
        %v324 = vmul.f32 %v321, %v323
        %v325 = vadd.f32 %v321, %v324
        %vm326 = vweird.f32 %v321
        %v327 = vsel %vm326, %v321, %v325
        %v328 = vmul.f32 %v302, %v327
        %v329 = vmul.f32 %v308, %v327
        %v330 = vmul.f32 %v314, %v327
        %v331 = vmul.f32 %v320, %v327
        %v332 = vmul.f32 %v288, %v288
        %v333 = vmul.f32 %v290, %v290
        %v334 = vmul.f32 %v293, %v293
        %v335 = vmul.f32 %v295, %v295
        %v336 = vrot.slane %v332, 4
        %v337 = vadd.f32 %v332, %v336
        %v338 = vrot.slane %v337, 2
        %v339 = vadd.f32 %v337, %v338
        %v340 = vrot.slane %v339, 1
        %v341 = vadd.f32 %v339, %v340
        %v342 = vrot.slane %v333, 4
        %v343 = vadd.f32 %v333, %v342
        %v344 = vrot.slane %v343, 2
        %v345 = vadd.f32 %v343, %v344
        %v346 = vrot.slane %v345, 1
        %v347 = vadd.f32 %v345, %v346
        %v348 = vrot.slane %v334, 4
        %v349 = vadd.f32 %v334, %v348
        %v350 = vrot.slane %v349, 2
        %v351 = vadd.f32 %v349, %v350
        %v352 = vrot.slane %v351, 1
        %v353 = vadd.f32 %v351, %v352
        %v354 = vrot.slane %v335, 4
        %v355 = vadd.f32 %v335, %v354
        %v356 = vrot.slane %v355, 2
        %v357 = vadd.f32 %v355, %v356
        %v358 = vrot.slane %v357, 1
        %v359 = vadd.f32 %v357, %v358
        %v360 = vmul.f32 %v341, %v327
        %v361 = vmul.f32 %v347, %v327
        %v362 = vmul.f32 %v353, %v327
        %v363 = vmul.f32 %v359, %v327
        %v364 = vmul.f32 %v328, %v328
        %v365 = vmul.f32 %v329, %v329
        %v366 = vmul.f32 %v330, %v330
        %v367 = vmul.f32 %v331, %v331
        %v368 = vsub.f32 %v360, %v364
        %v369 = vsub.f32 %v361, %v365
        %v370 = vsub.f32 %v362, %v366
        %v371 = vsub.f32 %v363, %v367
        %v372 = vmax.f32 %v368, 0.0
        %v373 = vmax.f32 %v369, 0.0
        %v374 = vmax.f32 %v370, 0.0
        %v375 = vmax.f32 %v371, 0.0
        %v376 = vadd.f32 %v372, 1e-05
        %v377 = vadd.f32 %v373, 1e-05
        %v378 = vadd.f32 %v374, 1e-05
        %v379 = vadd.f32 %v375, 1e-05
        %v380 = vrsqrt.pop %v376
        %v381 = vmul.f32 %v380, %v376
        %v382 = vmul.f32 %v381, %v380
        %v383 = vmul.f32 0.5, %v382
        %v384 = vsub.f32 1.5, %v383
        %v385 = vmul.f32 %v380, %v384
        %vm386 = vweird.f32 %v376
        %vm387 = vweird.f32 %v380
        %vm388 = vmor %vm386, %vm387
        %v389 = vsel %vm388, %v380, %v385
        %v390 = vrsqrt.pop %v377
        %v391 = vmul.f32 %v390, %v377
        %v392 = vmul.f32 %v391, %v390
        %v393 = vmul.f32 0.5, %v392
        %v394 = vsub.f32 1.5, %v393
        %v395 = vmul.f32 %v390, %v394
        %vm396 = vweird.f32 %v377
        %vm397 = vweird.f32 %v390
        %vm398 = vmor %vm396, %vm397
        %v399 = vsel %vm398, %v390, %v395
        %v400 = vrsqrt.pop %v378
        %v401 = vmul.f32 %v400, %v378
        %v402 = vmul.f32 %v401, %v400
        %v403 = vmul.f32 0.5, %v402
        %v404 = vsub.f32 1.5, %v403
        %v405 = vmul.f32 %v400, %v404
        %vm406 = vweird.f32 %v378
        %vm407 = vweird.f32 %v400
        %vm408 = vmor %vm406, %vm407
        %v409 = vsel %vm408, %v400, %v405
        %v410 = vrsqrt.pop %v379
        %v411 = vmul.f32 %v410, %v379
        %v412 = vmul.f32 %v411, %v410
        %v413 = vmul.f32 0.5, %v412
        %v414 = vsub.f32 1.5, %v413
        %v415 = vmul.f32 %v410, %v414
        %vm416 = vweird.f32 %v379
        %vm417 = vweird.f32 %v410
        %vm418 = vmor %vm416, %vm417
        %v419 = vsel %vm418, %v410, %v415
        %v420 = vmul.f32 %v244, %v389
        %v421 = vmul.f32 %v244, %v399
        %v422 = vmul.f32 %v244, %v409
        %v423 = vmul.f32 %v244, %v419
        %v424 = vmul.f32 %v328, %v420
        %v425 = vmul.f32 %v329, %v421
        %v426 = vmul.f32 %v330, %v422
        %v427 = vmul.f32 %v331, %v423
        %v428 = vsub.f32 %v245, %v424
        %v429 = vsub.f32 %v245, %v425
        %v430 = vsub.f32 %v245, %v426
        %v431 = vsub.f32 %v245, %v427
        %v432 = vperm.slane %v420, 0
        %v433 = vperm.slane %v421, 0
        %v434 = vperm.slane %v422, 0
        %v435 = vperm.slane %v423, 0
        %v436 = vmul.f32 %v288, %v432
        %v437 = vmul.f32 %v290, %v433
        %v438 = vmul.f32 %v293, %v434
        %v439 = vmul.f32 %v295, %v435
        %v440 = vperm.slane %v428, 0
        %v441 = vperm.slane %v429, 0
        %v442 = vperm.slane %v430, 0
        %v443 = vperm.slane %v431, 0
        %v444 = vadd.f32 %v436, %v440
        %v445 = vadd.f32 %v437, %v441
        %v446 = vadd.f32 %v438, %v442
        %v447 = vadd.f32 %v439, %v443
        %v448 = vmax.f32 %v444, 0.0
        %v449 = vmax.f32 %v445, 0.0
        %v450 = vmax.f32 %v446, 0.0
        %v451 = vmax.f32 %v447, 0.0
        %v452 = vpack.c.bf16 %v449, %v448
        %v453 = vpack.c.bf16 %v451, %v450
        %v454 = vld [vmem:[%s2] sm:$0xf]
        %v455 = vld [vmem:[%s2 + $0x4] sm:$0xf]
        %v456 = vld [vmem:[%s2 + $0x8] sm:$0xf]
        %v457 = vld [vmem:[%s2 + $0xc] sm:$0xf]
        %v458 = vld [vmem:[%s2 + $0x10] sm:$0xf]
        %v459 = vld [vmem:[%s2 + $0x14] sm:$0xf]
        %v460 = vld [vmem:[%s2 + $0x18] sm:$0xf]
        %v461 = vld [vmem:[%s2 + $0x1c] sm:$0xf]
        %v462 = vld [vmem:[%s2 + $0x20] sm:$0xf]
        %v463 = vld [vmem:[%s2 + $0x24] sm:$0xf]
        %v464 = vld [vmem:[%s2 + $0x28] sm:$0xf]
        %v465 = vld [vmem:[%s2 + $0x2c] sm:$0xf]
        %v466 = vld [vmem:[%s2 + $0x30] sm:$0xf]
        %v467 = vld [vmem:[%s2 + $0x34] sm:$0xf]
        %v468 = vld [vmem:[%s2 + $0x38] sm:$0xf]
        %v469 = vld [vmem:[%s2 + $0x3c] sm:$0xf]
        %v486 = vunpack.c.l.b16 %v454
        %v487 = vunpack.c.l.b16 %v455
        %v488 = vunpack.c.l.b16 %v456
        %v489 = vunpack.c.l.b16 %v457
        %v490 = vunpack.c.l.b16 %v458
        %v491 = vunpack.c.l.b16 %v459
        %v492 = vunpack.c.l.b16 %v460
        %v493 = vunpack.c.l.b16 %v461
        %v494 = vunpack.c.l.b16 %v462
        %v495 = vunpack.c.l.b16 %v463
        %v496 = vunpack.c.l.b16 %v464
        %v497 = vunpack.c.l.b16 %v465
        %v498 = vunpack.c.l.b16 %v466
        %v499 = vunpack.c.l.b16 %v467
        %v500 = vunpack.c.l.b16 %v468
        %v501 = vunpack.c.l.b16 %v469
        %v502 = vpack.c.b16 %v487, %v486
        %v503 = vpack.c.b16 %v489, %v488
        %v504 = vpack.c.b16 %v491, %v490
        %v505 = vpack.c.b16 %v493, %v492
        %v506 = vpack.c.b16 %v495, %v494
        %v507 = vpack.c.b16 %v497, %v496
        %v508 = vpack.c.b16 %v499, %v498
        %v509 = vpack.c.b16 %v501, %v500
        %518 = vmatpush.bf16.msra.mxu0 %v509
        %519 = vmatpush.bf16.msra.mxu0 %v508
        %520 = vmatpush.bf16.msra.mxu0 %v507
        %521 = vmatpush.bf16.msra.mxu0 %v506
        %522 = vmatpush.bf16.msra.mxu0 %v505
        %523 = vmatpush.bf16.msra.mxu0 %v504
        %524 = vmatpush.bf16.msra.mxu0 %v503
        %525 = vmatpush.bf16.msra.mxu0 %v502
        %526 = vmatmul.bf16.gmra.mxu0 %v452
        %v527 = vpop.f32.mrf.mxu0
        %v528 = vadd.f32 0.0, %v527
        %v529 = vpop.f32.mrf.mxu0
        %v530 = vadd.f32 0.0, %v529
        %531 = vmatmul.bf16.gmra.mxu0 %v453
        %v532 = vpop.f32.mrf.mxu0
        %v533 = vadd.f32 0.0, %v532
        %v534 = vpop.f32.mrf.mxu0
        %v535 = vadd.f32 0.0, %v534
        %536 = vdwg.mxu0
        %v537 = vrot.slane %v528, 4
        %v538 = vadd.f32 %v528, %v537
        %v539 = vrot.slane %v538, 2
        %v540 = vadd.f32 %v538, %v539
        %v541 = vrot.slane %v540, 1
        %v542 = vadd.f32 %v540, %v541
        %v543 = vrot.slane %v530, 4
        %v544 = vadd.f32 %v530, %v543
        %v545 = vrot.slane %v544, 2
        %v546 = vadd.f32 %v544, %v545
        %v547 = vrot.slane %v546, 1
        %v548 = vadd.f32 %v546, %v547
        %v549 = vrot.slane %v533, 4
        %v550 = vadd.f32 %v533, %v549
        %v551 = vrot.slane %v550, 2
        %v552 = vadd.f32 %v550, %v551
        %v553 = vrot.slane %v552, 1
        %v554 = vadd.f32 %v552, %v553
        %v555 = vrot.slane %v535, 4
        %v556 = vadd.f32 %v535, %v555
        %v557 = vrot.slane %v556, 2
        %v558 = vadd.f32 %v556, %v557
        %v559 = vrot.slane %v558, 1
        %v560 = vadd.f32 %v558, %v559
        %v561 = vmul.f32 %v542, %v327
        %v562 = vmul.f32 %v548, %v327
        %v563 = vmul.f32 %v554, %v327
        %v564 = vmul.f32 %v560, %v327
        %v565 = vmul.f32 %v528, %v528
        %v566 = vmul.f32 %v530, %v530
        %v567 = vmul.f32 %v533, %v533
        %v568 = vmul.f32 %v535, %v535
        %v569 = vrot.slane %v565, 4
        %v570 = vadd.f32 %v565, %v569
        %v571 = vrot.slane %v570, 2
        %v572 = vadd.f32 %v570, %v571
        %v573 = vrot.slane %v572, 1
        %v574 = vadd.f32 %v572, %v573
        %v575 = vrot.slane %v566, 4
        %v576 = vadd.f32 %v566, %v575
        %v577 = vrot.slane %v576, 2
        %v578 = vadd.f32 %v576, %v577
        %v579 = vrot.slane %v578, 1
        %v580 = vadd.f32 %v578, %v579
        %v581 = vrot.slane %v567, 4
        %v582 = vadd.f32 %v567, %v581
        %v583 = vrot.slane %v582, 2
        %v584 = vadd.f32 %v582, %v583
        %v585 = vrot.slane %v584, 1
        %v586 = vadd.f32 %v584, %v585
        %v587 = vrot.slane %v568, 4
        %v588 = vadd.f32 %v568, %v587
        %v589 = vrot.slane %v588, 2
        %v590 = vadd.f32 %v588, %v589
        %v591 = vrot.slane %v590, 1
        %v592 = vadd.f32 %v590, %v591
        %v593 = vmul.f32 %v574, %v327
        %v594 = vmul.f32 %v580, %v327
        %v595 = vmul.f32 %v586, %v327
        %v596 = vmul.f32 %v592, %v327
        %v597 = vmul.f32 %v561, %v561
        %v598 = vmul.f32 %v562, %v562
        %v599 = vmul.f32 %v563, %v563
        %v600 = vmul.f32 %v564, %v564
        %v601 = vsub.f32 %v593, %v597
        %v602 = vsub.f32 %v594, %v598
        %v603 = vsub.f32 %v595, %v599
        %v604 = vsub.f32 %v596, %v600
        %v605 = vmax.f32 %v601, 0.0
        %v606 = vmax.f32 %v602, 0.0
        %v607 = vmax.f32 %v603, 0.0
        %v608 = vmax.f32 %v604, 0.0
        %v609 = vadd.f32 %v605, 1e-05
        %v610 = vadd.f32 %v606, 1e-05
        %v611 = vadd.f32 %v607, 1e-05
        %v612 = vadd.f32 %v608, 1e-05
        %v613 = vrsqrt.pop %v609
        %v614 = vmul.f32 %v613, %v609
        %v615 = vmul.f32 %v614, %v613
        %v616 = vmul.f32 0.5, %v615
        %v617 = vsub.f32 1.5, %v616
        %v618 = vmul.f32 %v613, %v617
        %vm619 = vweird.f32 %v609
        %vm620 = vweird.f32 %v613
        %vm621 = vmor %vm619, %vm620
        %v622 = vsel %vm621, %v613, %v618
        %v623 = vrsqrt.pop %v610
        %v624 = vmul.f32 %v623, %v610
        %v625 = vmul.f32 %v624, %v623
        %v626 = vmul.f32 0.5, %v625
        %v627 = vsub.f32 1.5, %v626
        %v628 = vmul.f32 %v623, %v627
        %vm629 = vweird.f32 %v610
        %vm630 = vweird.f32 %v623
        %vm631 = vmor %vm629, %vm630
        %v632 = vsel %vm631, %v623, %v628
        %v633 = vrsqrt.pop %v611
        %v634 = vmul.f32 %v633, %v611
        %v635 = vmul.f32 %v634, %v633
        %v636 = vmul.f32 0.5, %v635
        %v637 = vsub.f32 1.5, %v636
        %v638 = vmul.f32 %v633, %v637
        %vm639 = vweird.f32 %v611
        %vm640 = vweird.f32 %v633
        %vm641 = vmor %vm639, %vm640
        %v642 = vsel %vm641, %v633, %v638
        %v643 = vrsqrt.pop %v612
        %v644 = vmul.f32 %v643, %v612
        %v645 = vmul.f32 %v644, %v643
        %v646 = vmul.f32 0.5, %v645
        %v647 = vsub.f32 1.5, %v646
        %v648 = vmul.f32 %v643, %v647
        %vm649 = vweird.f32 %v612
        %vm650 = vweird.f32 %v643
        %vm651 = vmor %vm649, %vm650
        %v652 = vsel %vm651, %v643, %v648
        %v653 = vmul.f32 %v246, %v622
        %v654 = vmul.f32 %v246, %v632
        %v655 = vmul.f32 %v246, %v642
        %v656 = vmul.f32 %v246, %v652
        %v657 = vmul.f32 %v561, %v653
        %v658 = vmul.f32 %v562, %v654
        %v659 = vmul.f32 %v563, %v655
        %v660 = vmul.f32 %v564, %v656
        %v661 = vsub.f32 %v247, %v657
        %v662 = vsub.f32 %v247, %v658
        %v663 = vsub.f32 %v247, %v659
        %v664 = vsub.f32 %v247, %v660
        %v665 = vperm.slane %v653, 0
        %v666 = vperm.slane %v654, 0
        %v667 = vperm.slane %v655, 0
        %v668 = vperm.slane %v656, 0
        %v669 = vmul.f32 %v528, %v665
        %v670 = vmul.f32 %v530, %v666
        %v671 = vmul.f32 %v533, %v667
        %v672 = vmul.f32 %v535, %v668
        %v673 = vperm.slane %v661, 0
        %v674 = vperm.slane %v662, 0
        %v675 = vperm.slane %v663, 0
        %v676 = vperm.slane %v664, 0
        %v677 = vadd.f32 %v669, %v673
        %v678 = vadd.f32 %v670, %v674
        %v679 = vadd.f32 %v671, %v675
        %v680 = vadd.f32 %v672, %v676
        %v681 = vmax.f32 %v677, 0.0
        %v682 = vmax.f32 %v678, 0.0
        %v683 = vmax.f32 %v679, 0.0
        %v684 = vmax.f32 %v680, 0.0
        %v685 = vpack.c.bf16 %v682, %v681
        %v686 = vpack.c.bf16 %v684, %v683
        %v687 = vld [vmem:[#allocation2] sm:$0xf]
        %v688 = vld [vmem:[#allocation2 + $0x4] sm:$0xf]
        %v689 = vld [vmem:[#allocation2 + $0x8] sm:$0xf]
        %v690 = vld [vmem:[#allocation2 + $0xc] sm:$0xf]
        %v691 = vld [vmem:[#allocation2 + $0x10] sm:$0xf]
        %v692 = vld [vmem:[#allocation2 + $0x14] sm:$0xf]
        %v693 = vld [vmem:[#allocation2 + $0x18] sm:$0xf]
        %v694 = vld [vmem:[#allocation2 + $0x1c] sm:$0xf]
        %v695 = vld [vmem:[#allocation2 + $0x20] sm:$0xf]
        %v696 = vld [vmem:[#allocation2 + $0x24] sm:$0xf]
        %v697 = vld [vmem:[#allocation2 + $0x28] sm:$0xf]
        %v698 = vld [vmem:[#allocation2 + $0x2c] sm:$0xf]
        %v699 = vld [vmem:[#allocation2 + $0x30] sm:$0xf]
        %v700 = vld [vmem:[#allocation2 + $0x34] sm:$0xf]
        %v701 = vld [vmem:[#allocation2 + $0x38] sm:$0xf]
        %v702 = vld [vmem:[#allocation2 + $0x3c] sm:$0xf]
        %v703 = vperm.slane %v248, 0
        %v720 = vunpack.c.l.b16 %v687
        %v721 = vunpack.c.l.b16 %v688
        %v722 = vunpack.c.l.b16 %v689
        %v723 = vunpack.c.l.b16 %v690
        %v724 = vunpack.c.l.b16 %v691
        %v725 = vunpack.c.l.b16 %v692
        %v726 = vunpack.c.l.b16 %v693
        %v727 = vunpack.c.l.b16 %v694
        %v728 = vunpack.c.l.b16 %v695
        %v729 = vunpack.c.l.b16 %v696
        %v730 = vunpack.c.l.b16 %v697
        %v731 = vunpack.c.l.b16 %v698
        %v732 = vunpack.c.l.b16 %v699
        %v733 = vunpack.c.l.b16 %v700
        %v734 = vunpack.c.l.b16 %v701
        %v735 = vunpack.c.l.b16 %v702
        %v736 = vpack.c.b16 %v721, %v720
        %v737 = vpack.c.b16 %v723, %v722
        %v738 = vpack.c.b16 %v725, %v724
        %v739 = vpack.c.b16 %v727, %v726
        %v740 = vpack.c.b16 %v729, %v728
        %v741 = vpack.c.b16 %v731, %v730
        %v742 = vpack.c.b16 %v733, %v732
        %v743 = vpack.c.b16 %v735, %v734
        %752 = vmatpush.bf16.msra.mxu0 %v743
        %753 = vmatpush.bf16.msra.mxu0 %v742
        %754 = vmatpush.bf16.msra.mxu0 %v741
        %755 = vmatpush.bf16.msra.mxu0 %v740
        %756 = vmatpush.bf16.msra.mxu0 %v739
        %757 = vmatpush.bf16.msra.mxu0 %v738
        %758 = vmatpush.bf16.msra.mxu0 %v737
        %759 = vmatpush.bf16.msra.mxu0 %v736
        %760 = vmatmul.bf16.gmra.mxu0 %v685
        %v761 = vpop.f32.mrf.mxu0
        %v762 = vadd.f32 %v703, %v761
        %v763 = vpop.f32.mrf.mxu0
        %v764 = vadd.f32 %v703, %v763
        %765 = vmatmul.bf16.gmra.mxu0 %v686
        %v766 = vpop.f32.mrf.mxu0
        %v767 = vadd.f32 %v703, %v766
        %v768 = vpop.f32.mrf.mxu0
        %v769 = vadd.f32 %v703, %v768
        %770 = vdwg.mxu0
        %771 = vmax.xlane.f32.xlu0 %v762
        %v772 = vpop.xlane.xlu0 %771
        %773 = vmax.xlane.f32.xlu0 %v764
        %v774 = vpop.xlane.xlu0 %773
        %775 = vmax.xlane.f32.xlu0 %v767
        %v776 = vpop.xlane.xlu0 %775
        %777 = vmax.xlane.f32.xlu0 %v769
        %v778 = vpop.xlane.xlu0 %777
        %v779 = vsub.f32 %v762, %v772
        %v780 = vsub.f32 %v764, %v774
        %v781 = vsub.f32 %v767, %v776
        %v782 = vsub.f32 %v769, %v778
        %v783 = vmul.f32 %v779, 1.442695
        %v784 = vpow.pop %v783
        %v785 = vmul.f32 %v780, 1.442695
        %v786 = vpow.pop %v785
        %v787 = vmul.f32 %v781, 1.442695
        %v788 = vpow.pop %v787
        %v789 = vmul.f32 %v782, 1.442695
        %v790 = vpow.pop %v789
        %791 = vadd.xlane.f32.xlu0 %v784
        %v792 = vpop.xlane.xlu0 %791
        %793 = vadd.xlane.f32.xlu0 %v786
        %v794 = vpop.xlane.xlu0 %793
        %795 = vadd.xlane.f32.xlu0 %v788
        %v796 = vpop.xlane.xlu0 %795
        %797 = vadd.xlane.f32.xlu0 %v790
        %v798 = vpop.xlane.xlu0 %797
        %v799 = vlog2.pop %v792
        %v800 = vmul.f32 %v799, 0.6931472
        %v801 = vlog2.pop %v794
        %v802 = vmul.f32 %v801, 0.6931472
        %v803 = vlog2.pop %v796
        %v804 = vmul.f32 %v803, 0.6931472
        %v805 = vlog2.pop %v798
        %v806 = vmul.f32 %v805, 0.6931472
        %v807 = vsub.f32 %v779, %v800
        %v808 = vsub.f32 %v780, %v802
        %v809 = vsub.f32 %v781, %v804
        %v810 = vsub.f32 %v782, %v806
        %811 = vst [vmem:[%s235] sm:$0xff] %v807
        %812 = vst [vmem:[%s235 + $0x8] sm:$0xff] %v808
        %813 = vst [vmem:[%s235 + $0x10] sm:$0xff] %v809
        %814 = vst [vmem:[%s235 + $0x18] sm:$0xff] %v810
        %s815 = sand.u32 %s138, 1
        %s816 = scalar_lea.sflag [#allocation4], %s815
        %s817 = sand.u32 %s138, 1
        %s818 = smul.addr %s817, 32
        %s819 = scalar_lea.vmem [#allocation5], %s818
        // Predicated region
        $region45: #{tpu_custom_call.1} parent=39 // pred_check
          %p820 = pneg %p148
        $region46: #{tpu_custom_call.1} parent=39 // pred_check_branch
          %822 = sbr.rel (%p820) target = $region48
        $region47: #{tpu_custom_call.1} parent=39 // pred_region
          %s823 = smul.u32 4, %s20
          %825 = vsyncadd %s816, 0
          %s826 = smul.addr %s823, 8
          %s827 = scalar_lea.hbm %s5, %s826
          %s828 = sshll.u32 %s819, 4
          %s829 = int_to_ptr.vmem [resolvable:$true] %s828
          %s830 = sshll.u32 %s827, 4
          %s831 = int_to_ptr.hbm [resolvable:$true] %s830
          %836 = dma.vmem_to_hbm [thread:$0]  %s829, 512, %s831, %s816, 128, 128, 8
        $region48: #{tpu_custom_call.1} parent=39 // pred_fallthru
          _
      $region40: #{tpu_custom_call.1} parent=5 // pred_fallthru
        _
      %p837 = scmp.le.s32.totalorder 2, %s15
      // Predicated region
      $region49: #{tpu_custom_call.1} parent=5 // pred_check
        %p838 = pneg %p837
      $region50: #{tpu_custom_call.1} parent=5 // pred_check_branch
        %840 = sbr.rel (%p838) target = $region52
      $region51: #{tpu_custom_call.1} parent=5 // pred_region
        %s841 = ssub.s32 %s15, 2
        // Predicated region
        $region53: #{tpu_custom_call.1} parent=51 // pred_check
          %p842 = pneg %p154
        $region54: #{tpu_custom_call.1} parent=51 // pred_check_branch
          %844 = sbr.rel (%p842) target = $region56
        $region55: #{tpu_custom_call.1} parent=51 // pred_region
          %s845 = sand.u32 %s139, 1
          %s846 = scalar_lea.sflag [#allocation4], %s845
          %s847 = sand.u32 %s139, 1
          %s848 = smul.addr %s847, 32
          %s849 = scalar_lea.vmem [#allocation5], %s848
          %851 = dma.done %s846, 512
        $region56: #{tpu_custom_call.1} parent=51 // pred_fallthru
          _
      $region52: #{tpu_custom_call.1} parent=5 // pred_fallthru
        _
    $region6: #{tpu_custom_call.1} parent=1 // loop_footer
      %s19 = sadd.s32 1, %s15
    $region7: #{tpu_custom_call.1} parent=1 // loop_footer_branch
      %14 = sbr.rel target = $region3
    $region8: #{tpu_custom_call.1} parent=1 // loop_exit
      _
    %852 = vsyncpa [#allocation3], 1
    %s853 = scalar_lea.sflag [#allocation3], 1
    %854 = vsyncpa %s853, 1
    %855 = vsyncpa [#allocation4], 1
    %s856 = scalar_lea.sflag [#allocation4], 1
    %857 = vsyncpa %s856, 1

</llo_original>
